<compile_context>
chip_gen: v7x
topology: tpu7x:2x2x1
jax: 0.10.0
libtpu: 0.0.40
codegen_flags: <defaults>
</compile_context>

<pallas_src>
import functools

import jax
import jax.numpy as jnp
from jax import lax
from jax.experimental import pallas as pl
from jax.experimental.pallas import tpu as pltpu


def _contrastive_kernel(x_i_ref, x_j_ref, o_ref, *, margin):
    i = pl.program_id(0)
    j = pl.program_id(1)

    xi = x_i_ref[...]                      # (tile_i, D), native dtype
    xj = x_j_ref[...]                      # (tile_j, D), native dtype
    tile_i = xi.shape[0]
    tile_j = xj.shape[0]

    # Row norms in f32 (O(tile*D) on VPU/XLU, negligible vs the MXU matmul).
    xi_f = xi.astype(jnp.float32)
    xj_f = xj.astype(jnp.float32)
    sq_i = jnp.sum(xi_f * xi_f, axis=-1, keepdims=True)        # (tile_i, 1)
    sq_j = jnp.sum(xj_f * xj_f, axis=-1, keepdims=True)        # (tile_j, 1)

    # Gram block xi @ xj^T on the MXU; accumulate in f32.
    g = lax.dot_general(
        xi, xj,
        dimension_numbers=(((1,), (1,)), ((), ())),
        preferred_element_type=jnp.float32,
    )                                                          # (tile_i, tile_j)

    dist = sq_i + jnp.transpose(sq_j) - 2.0 * g
    dist = jnp.maximum(dist, 0.0)          # clamp fp residuals of the Gram form

    # Hinge term for negative pairs.
    hinge = jnp.maximum(margin - dist, 0.0)

    # Positive pairs (global row == global col) contribute exactly 0 in the
    # reference, so mask the diagonal out of the sum.
    row = lax.broadcasted_iota(jnp.int32, (tile_i, tile_j), 0) + i * tile_i
    col = lax.broadcasted_iota(jnp.int32, (tile_i, tile_j), 1) + j * tile_j
    contrib = jnp.where(row != col, hinge, 0.0)

    partial = jnp.sum(contrib)             # f32 scalar for this (i, j) tile

    # Accumulate across the j ("arbitrary") axis into the per-i output block,
    # which stays resident in VMEM until the i block index changes.
    @pl.when(j == 0)
    def _():
        o_ref[...] = jnp.zeros_like(o_ref)

    o_ref[...] = o_ref[...] + partial      # value replicated over (8,128) block


def _pick_tile(b, d, itemsize):
    # 256-aligned tiles feed v6e/v7x's 2x256 MXU; 128 also saturates v5e's
    # 4x128 MXU. Fall back to the whole batch for small / odd sizes.
    for t in (256, 128):
        if b % t == 0 and 4 * t * d * itemsize <= (24 << 20):
            return t
    return b


def contrastive_loss(embeddings, margin=1.0, tile_b=None):
    """embeddings: (B, D) float array. Returns scalar contrastive loss."""
    B, D = embeddings.shape
    itemsize = jnp.dtype(embeddings.dtype).itemsize
    if tile_b is None:
        tile_b = _pick_tile(B, D, itemsize)
    assert B % tile_b == 0, (B, tile_b)
    n_tiles = B // tile_b

    kernel = functools.partial(_contrastive_kernel, margin=float(margin))

    # Rough VMEM budget: double-buffered input tiles (x2 specs), f32 copies for
    # the row norms, and the (tile,tile) f32 intermediates, plus headroom.
    # Capped comfortably below v7x's 64 MiB physical VMEM.
    est = (4 * tile_b * D * itemsize
           + 4 * tile_b * D * 4
           + 8 * tile_b * tile_b * 4
           + (4 << 20))
    vmem_limit = int(min(max(est, 32 << 20), 48 << 20))

    partials = pl.pallas_call(
        kernel,
        out_shape=jax.ShapeDtypeStruct((n_tiles * 8, 128), jnp.float32),
        grid_spec=pltpu.PrefetchScalarGridSpec(
            num_scalar_prefetch=0,
            grid=(n_tiles, n_tiles),
            in_specs=[
                pl.BlockSpec((tile_b, D), lambda i, j: (i, 0)),   # i-tile rows
                pl.BlockSpec((tile_b, D), lambda i, j: (j, 0)),   # j-tile rows
            ],
            out_specs=pl.BlockSpec((8, 128), lambda i, j: (i, 0)),
        ),
        compiler_params=pltpu.CompilerParams(
            dimension_semantics=("parallel", "arbitrary"),
            vmem_limit_bytes=vmem_limit,
        ),
    )(embeddings, embeddings)

    # Each (8,128) output block holds its i-tile partial sum replicated; take
    # one element per block, reduce, and apply the single 1/B^2 scale.
    per_tile = partials.reshape(n_tiles, 8, 128)[:, 0, 0]
    return jnp.sum(per_tile) * (1.0 / (B * B))


def contrastive_loss_ref(embeddings, margin=1.0):
    """Pure-JAX reference mirroring the PyTorch forward exactly."""
    B, D = embeddings.shape
    e = embeddings.astype(jnp.float32)
    labels = jnp.eye(B, dtype=jnp.float32).reshape(-1)
    x1 = jnp.tile(e, (B, 1))                      # torch .repeat(B, 1)
    x2 = jnp.repeat(e, B, axis=0)                 # torch .repeat_interleave
    dist = jnp.sum((x1 - x2) ** 2, axis=1)
    positive = labels * dist
    negative = (1.0 - labels) * jnp.maximum(margin - dist, 0.0)
    return jnp.mean(positive + negative)


if __name__ == "__main__":
    key = jax.random.PRNGKey(0)
    k1, k2 = jax.random.split(key)

    # Small single-tile case (module takes (B, D) embeddings). Scale keeps the
    # pairwise distances near the margin so the hinge is exercised.
    emb_small = 0.15 * jax.random.normal(k1, (8, 32), dtype=jnp.float32)
    loss_small = jax.block_until_ready(contrastive_loss(emb_small, margin=1.0))
    ref_small = contrastive_loss_ref(emb_small, margin=1.0)
    assert jnp.allclose(loss_small, ref_small, rtol=1e-4, atol=1e-5), (
        loss_small, ref_small)

    # Multi-tile case exercising the (i, j) grid, the resident accumulator and
    # the cross-tile diagonal masking.
    emb_tiled = 0.15 * jax.random.normal(k2, (16, 32), dtype=jnp.float32)
    loss_tiled = jax.block_until_ready(
        contrastive_loss(emb_tiled, margin=2.0, tile_b=8))
    ref_tiled = contrastive_loss_ref(emb_tiled, margin=2.0)
    assert jnp.allclose(loss_tiled, ref_tiled, rtol=1e-4, atol=1e-5), (
        loss_tiled, ref_tiled)

    print("KERNEL_OK")
</pallas_src>

<mosaic_0001>
module attributes {stable_mosaic.version = 11 : i64} {
  func.func @_contrastive_kernel(%arg0: i32, %arg1: i32, %arg2: memref<8x32xf32, #tpu.memory_space<vmem>>, %arg3: memref<8x32xf32, #tpu.memory_space<vmem>>, %arg4: memref<8x128xf32, #tpu.memory_space<vmem>>) attributes {dimension_semantics = [#tpu.dimension_semantics<parallel>, #tpu.dimension_semantics<arbitrary>], iteration_bounds = array<i64: 1, 1>, scalar_prefetch = 0 : i64, scratch_operands = 0 : i64, tpu.core_type = #tpu.core_type<tc>, window_params = [{transform_indices = @transform_0, window_bounds = array<i64: 8, 32>}, {transform_indices = @transform_1, window_bounds = array<i64: 8, 32>}, {transform_indices = @transform_2, window_bounds = array<i64: 8, 128>}]} {
    %c0 = arith.constant 0 : index
    %c0_0 = arith.constant 0 : index
    %0 = vector.load %arg2[%c0, %c0_0] : memref<8x32xf32, #tpu.memory_space<vmem>>, vector<8x32xf32>
    %c0_1 = arith.constant 0 : index
    %c0_2 = arith.constant 0 : index
    %1 = vector.load %arg3[%c0_1, %c0_2] : memref<8x32xf32, #tpu.memory_space<vmem>>, vector<8x32xf32>
    %2 = arith.mulf %0, %0 : vector<8x32xf32>
    %cst = arith.constant dense<0.000000e+00> : vector<8xf32>
    %3 = vector.multi_reduction <add>, %2, %cst [1] : vector<8x32xf32> to vector<8xf32>
    %4 = vector.shape_cast %3 : vector<8xf32> to vector<8x1xf32>
    %5 = arith.mulf %1, %1 : vector<8x32xf32>
    %cst_3 = arith.constant dense<0.000000e+00> : vector<8xf32>
    %6 = vector.multi_reduction <add>, %5, %cst_3 [1] : vector<8x32xf32> to vector<8xf32>
    %7 = vector.shape_cast %6 : vector<8xf32> to vector<8x1xf32>
    %cst_4 = arith.constant dense<0.000000e+00> : vector<8x8xf32>
    %8 = tpu.matmul %0, %1, %cst_4 {dimension_numbers = #tpu.dot_dimension_numbers<[1], [1], [0], [0], [0, 0, 1, 0], [], []>} : vector<8x32xf32>, vector<8x32xf32>, vector<8x8xf32> -> vector<8x8xf32>
    %9 = tpu.transpose %7, [1, 0] : vector<8x1xf32> -> vector<1x8xf32>
    %10 = vector.broadcast %4 : vector<8x1xf32> to vector<8x8xf32>
    %11 = vector.broadcast %9 : vector<1x8xf32> to vector<8x8xf32>
    %12 = arith.addf %10, %11 : vector<8x8xf32>
    %cst_5 = arith.constant 2.000000e+00 : f32
    %13 = vector.broadcast %cst_5 : f32 to vector<8x8xf32>
    %14 = arith.mulf %13, %8 : vector<8x8xf32>
    %15 = arith.subf %12, %14 : vector<8x8xf32>
    %cst_6 = arith.constant 0.000000e+00 : f32
    %16 = vector.broadcast %cst_6 : f32 to vector<8x8xf32>
    %17 = arith.maximumf %15, %16 : vector<8x8xf32>
    %cst_7 = arith.constant 1.000000e+00 : f32
    %18 = vector.broadcast %cst_7 : f32 to vector<8x8xf32>
    %19 = arith.subf %18, %17 : vector<8x8xf32>
    %cst_8 = arith.constant 0.000000e+00 : f32
    %20 = vector.broadcast %cst_8 : f32 to vector<8x8xf32>
    %21 = arith.maximumf %19, %20 : vector<8x8xf32>
    %22 = tpu.iota {dimensions = array<i32: 0>} : vector<8x8xi32>
    %c8_i32 = arith.constant 8 : i32
    %23 = arith.muli %arg0, %c8_i32 : i32
    %24 = vector.broadcast %23 : i32 to vector<8x8xi32>
    %25 = arith.addi %22, %24 : vector<8x8xi32>
    %26 = tpu.iota {dimensions = array<i32: 1>} : vector<8x8xi32>
    %c8_i32_9 = arith.constant 8 : i32
    %27 = arith.muli %arg1, %c8_i32_9 : i32
    %28 = vector.broadcast %27 : i32 to vector<8x8xi32>
    %29 = arith.addi %26, %28 : vector<8x8xi32>
    %30 = arith.cmpi ne, %25, %29 : vector<8x8xi32>
    %cst_10 = arith.constant 0.000000e+00 : f32
    %31 = vector.broadcast %cst_10 : f32 to vector<8x8xf32>
    %32 = arith.select %30, %21, %31 : vector<8x8xi1>, vector<8x8xf32>
    %33 = vector.shape_cast %32 : vector<8x8xf32> to vector<1x8x8xf32>
    %cst_11 = arith.constant dense<0.000000e+00> : vector<1xf32>
    %34 = vector.multi_reduction <add>, %33, %cst_11 [1, 2] : vector<1x8x8xf32> to vector<1xf32>
    %35 = vector.shape_cast %34 : vector<1xf32> to vector<1x1x1xf32>
    %36 = vector.extract %35[0, 0, 0] : f32 from vector<1x1x1xf32>
    %c0_i32 = arith.constant 0 : i32
    %37 = arith.cmpi eq, %arg1, %c0_i32 : i32
    %38 = arith.extui %37 : i1 to i32
    %c0_i32_12 = arith.constant 0 : i32
    %39 = arith.cmpi ne, %38, %c0_i32_12 : i32
    scf.if %39 {
      %cst_17 = arith.constant 0.000000e+00 : f32
      %44 = vector.broadcast %cst_17 : f32 to vector<8x128xf32>
      %c0_18 = arith.constant 0 : index
      %c0_19 = arith.constant 0 : index
      %45 = vector.load %arg4[%c0_18, %c0_19] : memref<8x128xf32, #tpu.memory_space<vmem>>, vector<8x128xf32>
      tpu.vector_store %arg4[%c0_18, %c0_19], %44 {strides = array<i32>} : memref<8x128xf32, #tpu.memory_space<vmem>>, vector<8x128xf32>,
    } else {
    }
    %c0_13 = arith.constant 0 : index
    %c0_14 = arith.constant 0 : index
    %40 = vector.load %arg4[%c0_13, %c0_14] : memref<8x128xf32, #tpu.memory_space<vmem>>, vector<8x128xf32>
    %41 = vector.broadcast %36 : f32 to vector<8x128xf32>
    %42 = arith.addf %40, %41 : vector<8x128xf32>
    %c0_15 = arith.constant 0 : index
    %c0_16 = arith.constant 0 : index
    %43 = vector.load %arg4[%c0_15, %c0_16] : memref<8x128xf32, #tpu.memory_space<vmem>>, vector<8x128xf32>
    tpu.vector_store %arg4[%c0_15, %c0_16], %42 {strides = array<i32>} : memref<8x128xf32, #tpu.memory_space<vmem>>, vector<8x128xf32>,
    return
  }
  func.func @transform_0(%arg0: i32, %arg1: i32) -> (i32, i32) {
    %c0_i32 = arith.constant 0 : i32
    %c0_i32_0 = arith.constant 0 : i32
    return %arg0, %c0_i32 : i32, i32
  }
  func.func @transform_1(%arg0: i32, %arg1: i32) -> (i32, i32) {
    %c0_i32 = arith.constant 0 : i32
    %c0_i32_0 = arith.constant 0 : i32
    return %arg1, %c0_i32 : i32, i32
  }
  func.func @transform_2(%arg0: i32, %arg1: i32) -> (i32, i32) {
    %c0_i32 = arith.constant 0 : i32
    %c0_i32_0 = arith.constant 0 : i32
    return %arg0, %c0_i32 : i32, i32
  }
}

</mosaic_0001>

<llo_original>
// kernel: tpu_custom_call.1
$region0: #{tpu_custom_call.1}
  #allocation0 [shape = 'u32[]', space=smem, size = 0x4, offset = 0x4, fixed_abs, tag = 'smem constant byte address 0x4 - core index']
  #allocation1 [shape = 'u32[144,128]{1,0:T(1,128)}', space=vmem, size = 0x12000, scoped, tag = 'internal scratch']
  %s0 = inlined_call_operand.hbm [shape: f32[8,32], index: 0, kind: input, shape index: {}]
  %s1 = inlined_call_operand.hbm [shape: f32[8,32], index: 1, kind: input, shape index: {}]
  %s2 = inlined_call_operand.hbm [shape: f32[8,128], index: 2, kind: output, shape index: {}]
  %s3 = sld [smem:[#allocation0]]
  $region30: #{tpu_custom_call.1} parent=0
    _
  %s5 = ssub.s32 1, %s3
  %s6 = scalar_select 0, %s5, %s3
  $region1: #{tpu_custom_call.1} parent=0
    #allocation2 [shape = 'u8[4096]{0}', space=vmem, size = 0x1000, scoped, tag = 'input window, operand 0, single buffered']
    #allocation3 [shape = 's32[1]{0}', space=sflag, size = 0x4, scoped, tag = 'scoped memory for tpu_custom_call.1']
    #allocation4 [shape = 's32[1]{0}', space=sflag, size = 0x4, scoped, tag = 'scoped memory for tpu_custom_call.1']
    #allocation5 [shape = 'u8[4096]{0}', space=vmem, size = 0x1000, scoped, tag = 'input window, operand 1, single buffered']
    #allocation6 [shape = 's32[1]{0}', space=sflag, size = 0x4, scoped, tag = 'scoped memory for tpu_custom_call.1']
    #allocation7 [shape = 'u8[4096]{0}', space=vmem, size = 0x1000, scoped, tag = 'output window, operand 0, single buffered']
    %7 = vsyncpa [#allocation3], 0
    %8 = vsyncpa [#allocation6], 0
    %9 = vsyncpa [#allocation4], 0
    // Predicated region
    $region2: #{tpu_custom_call.1} parent=1 // pred_check
      _
    $region3: #{tpu_custom_call.1} parent=1 // pred_check_branch
      %11 = sbr.rel (0) target = $region5
    $region4: #{tpu_custom_call.1} parent=1 // pred_region
      %s13 = ssub.s32 128, 128
      %14 = vsyncadd [#allocation3], %s13
      %s16 = sshll.u32 [#allocation2], 4
      %s17 = int_to_ptr.vmem [resolvable:$true] %s16
      %19 = dma.hbm_to_vmem [thread:$0]  %s0, 128, %s17, [#allocation3]
    $region5: #{tpu_custom_call.1} parent=1 // pred_fallthru
      _
    // Predicated region
    $region6: #{tpu_custom_call.1} parent=1 // pred_check
      _
    $region7: #{tpu_custom_call.1} parent=1 // pred_check_branch
      %21 = sbr.rel (0) target = $region9
    $region8: #{tpu_custom_call.1} parent=1 // pred_region
      %s23 = ssub.s32 128, 128
      %24 = vsyncadd [#allocation6], %s23
      %s26 = sshll.u32 [#allocation5], 4
      %s27 = int_to_ptr.vmem [resolvable:$true] %s26
      %29 = dma.hbm_to_vmem [thread:$0]  %s1, 128, %s27, [#allocation6]
    $region9: #{tpu_custom_call.1} parent=1 // pred_fallthru
      _
    // Predicated region
    $region10: #{tpu_custom_call.1} parent=1 // pred_check
      _
    $region11: #{tpu_custom_call.1} parent=1 // pred_check_branch
      %31 = sbr.rel (0) target = $region13
    $region12: #{tpu_custom_call.1} parent=1 // pred_region
      %32 = dma.done [#allocation3], 128
    $region13: #{tpu_custom_call.1} parent=1 // pred_fallthru
      _
    // Predicated region
    $region14: #{tpu_custom_call.1} parent=1 // pred_check
      _
    $region15: #{tpu_custom_call.1} parent=1 // pred_check_branch
      %34 = sbr.rel (0) target = $region17
    $region16: #{tpu_custom_call.1} parent=1 // pred_region
      %35 = dma.done [#allocation6], 128
    $region17: #{tpu_custom_call.1} parent=1 // pred_fallthru
      _
    %v36 = vld [vmem:[#allocation2] sm:$0xff]
    %v37 = vld [vmem:[#allocation5] sm:$0xff]
    %v38 = vmul.f32 %v36, %v36
    %vm39 = vcmask 261120
    %v40 = vsel %vm39, %v38, 0.0
    %41 = vadd.xlane.f32.xlu0 %v40
    %v42 = vpop.xlane.xlu0 %41
    %v43 = vmul.f32 %v37, %v37
    %v44 = vsel %vm39, %v43, 0.0
    %45 = vadd.xlane.f32.xlu0 %v44
    %v46 = vpop.xlane.xlu0 %45
    %v48 = vsel %vm39, %v36, 0
    %v51 = vsel %vm39, %v37, 0
    %53 = vmatprep.subr.mxu0 0.0
    %54 = vmatpush1.xpose.msra.mxu0 %v51
    %55 = vmatprep.subr.mxu0 0.0
    %56 = vmatpush1.xpose.msra.mxu0 0.0
    %57 = vmatprep.subr.mxu0 0.0
    %58 = vmatpush1.xpose.msra.mxu0 0.0
    %59 = vmatprep.subr.mxu0 0.0
    %60 = vmatpush1.xpose.msra.mxu0 0.0
    %61 = vmatprep.subr.mxu0 0.0
    %62 = vmatpush1.xpose.msra.mxu0 0.0
    %63 = vmatprep.subr.mxu0 0.0
    %64 = vmatpush1.xpose.msra.mxu0 0.0
    %65 = vmatprep.subr.mxu0 0.0
    %66 = vmatpush1.xpose.msra.mxu0 0.0
    %67 = vmatprep.subr.mxu0 0.0
    %68 = vmatpush1.xpose.msra.mxu0 0.0
    %69 = vmatprep.subr.mxu0 0.0
    %70 = vmatpush1.xpose.msra.mxu0 0.0
    %71 = vmatprep.subr.mxu0 0.0
    %72 = vmatpush1.xpose.msra.mxu0 0.0
    %73 = vmatprep.subr.mxu0 0.0
    %74 = vmatpush1.xpose.msra.mxu0 0.0
    %75 = vmatprep.subr.mxu0 0.0
    %76 = vmatpush1.xpose.msra.mxu0 0.0
    %77 = vmatprep.subr.mxu0 0.0
    %78 = vmatpush1.xpose.msra.mxu0 0.0
    %79 = vmatprep.subr.mxu0 0.0
    %80 = vmatpush1.xpose.msra.mxu0 0.0
    %81 = vmatprep.subr.mxu0 0.0
    %82 = vmatpush1.xpose.msra.mxu0 0.0
    %83 = vmatprep.subr.mxu0 0.0
    %84 = vmatpush1.xpose.msra.mxu0 0.0
    %85 = vmatprep.subr.mxu0 0.0
    %86 = vmatpush1.xpose.msra.mxu0 0.0
    %87 = vmatprep.subr.mxu0 0.0
    %88 = vmatpush1.xpose.msra.mxu0 0.0
    %89 = vmatprep.subr.mxu0 0.0
    %90 = vmatpush1.xpose.msra.mxu0 0.0
    %91 = vmatprep.subr.mxu0 0.0
    %92 = vmatpush1.xpose.msra.mxu0 0.0
    %93 = vmatprep.subr.mxu0 0.0
    %94 = vmatpush1.xpose.msra.mxu0 0.0
    %95 = vmatprep.subr.mxu0 0.0
    %96 = vmatpush1.xpose.msra.mxu0 0.0
    %97 = vmatprep.subr.mxu0 0.0
    %98 = vmatpush1.xpose.msra.mxu0 0.0
    %99 = vmatprep.subr.mxu0 0.0
    %100 = vmatpush1.xpose.msra.mxu0 0.0
    %101 = vmatprep.subr.mxu0 0.0
    %102 = vmatpush1.xpose.msra.mxu0 0.0
    %103 = vmatprep.subr.mxu0 0.0
    %104 = vmatpush1.xpose.msra.mxu0 0.0
    %105 = vmatprep.subr.mxu0 0.0
    %106 = vmatpush1.xpose.msra.mxu0 0.0
    %107 = vmatprep.subr.mxu0 0.0
    %108 = vmatpush1.xpose.msra.mxu0 0.0
    %109 = vmatprep.subr.mxu0 0.0
    %110 = vmatpush1.xpose.msra.mxu0 0.0
    %111 = vmatprep.subr.mxu0 0.0
    %112 = vmatpush1.xpose.msra.mxu0 0.0
    %113 = vmatprep.subr.mxu0 0.0
    %114 = vmatpush1.xpose.msra.mxu0 0.0
    %115 = vmatprep.subr.mxu0 0.0
    %116 = vmatpush1.xpose.msra.mxu0 0.0
    %117 = vmatprep.mubr.f32.mxu0 0.0
    %118 = vmatmul.mubr.f32.gmra.mrb[0].mxu0 %v48
    %v119 = vpop.f32.mrb[0].mxu0
    %v120 = vadd.f32 0.0, %v119
    %v121 = vpop.f32.mrb[0].mxu0
    %122 = vdwg.mxu0
    %123 = vxpose.xlu0.b32.start [1/16] %v46, 128
    %124 = vxpose.xlu0.b32.cont [2/16] 0.0, 128
    %125 = vxpose.xlu0.b32.cont [3/16] 0.0, 128
    %126 = vxpose.xlu0.b32.cont [4/16] 0.0, 128
    %127 = vxpose.xlu0.b32.cont [5/16] 0.0, 128
    %128 = vxpose.xlu0.b32.cont [6/16] 0.0, 128
    %129 = vxpose.xlu0.b32.cont [7/16] 0.0, 128
    %130 = vxpose.xlu0.b32.cont [8/16] 0.0, 128
    %131 = vxpose.xlu0.b32.cont [9/16] 0.0, 128
    %132 = vxpose.xlu0.b32.cont [10/16] 0.0, 128
    %133 = vxpose.xlu0.b32.cont [11/16] 0.0, 128
    %134 = vxpose.xlu0.b32.cont [12/16] 0.0, 128
    %135 = vxpose.xlu0.b32.cont [13/16] 0.0, 128
    %136 = vxpose.xlu0.b32.cont [14/16] 0.0, 128
    %137 = vxpose.xlu0.b32.cont [15/16] 0.0, 128
    %138 = vxpose.xlu0.b32.end [16/16] 0.0, 128
    %v139 = vpop.trf.xlu0
    %v140 = vpop.trf.xlu0
    %v141 = vpop.trf.xlu0
    %v142 = vpop.trf.xlu0
    %v143 = vpop.trf.xlu0
    %v144 = vpop.trf.xlu0
    %v145 = vpop.trf.xlu0
    %v146 = vpop.trf.xlu0
    %v147 = vpop.trf.xlu0
    %v148 = vpop.trf.xlu0
    %v149 = vpop.trf.xlu0
    %v150 = vpop.trf.xlu0
    %v151 = vpop.trf.xlu0
    %v152 = vpop.trf.xlu0
    %v153 = vpop.trf.xlu0
    %v154 = vpop.trf.xlu0
    %v155 = vlaneseq
    %v156 = vshrl.u32 %v155, 7
    %v157 = vsub.s32 0, %v156
    %v158 = vrot.slane %v139, %v157
    %v159 = vadd.f32 %v42, %v158
    %v160 = vmul.f32 %v120, 2.0
    %v161 = vsub.f32 %v159, %v160
    %v162 = vmax.f32 %v161, 0.0
    %v163 = vsub.f32 1.0, %v162
    %v164 = vmax.f32 %v163, 0.0
    %v165 = vlaneseq
    %v166 = vshrl.u32 %v165, 7
    %s167 = smul.u32 0, 8
    %v168 = vstv %s167
    %v169 = vadd.s32 %v166, %v168
    %v170 = vlaneseq
    %v171 = vand.u32 %v170, 127
    %s172 = smul.u32 0, 8
    %v173 = vstv %s172
    %v174 = vadd.s32 %v171, %v173
    %vm175 = vcmp.ne.s32.totalorder %v169, %v174
    %v176 = vsel %vm175, %v164, 0.0
    %vm177 = vcmask 64512
    %v178 = vsel %vm177, %v176, 0.0
    %179 = vadd.xlane.f32.xlu0 %v178
    %v180 = vpop.xlane.xlu0 %179
    %v181 = vrot.slane %v180, 4
    %v182 = vadd.f32 %v180, %v181
    %v183 = vrot.slane %v182, 2
    %v184 = vadd.f32 %v182, %v183
    %v185 = vrot.slane %v184, 1
    %v186 = vadd.f32 %v184, %v185
    %s187 = vtos %v186
    %p188 = scmp.eq.s32.totalorder 0, 0
    // Predicated region
    $region18: #{tpu_custom_call.1} parent=1 // pred_check
      %p189 = pneg %p188
    $region19: #{tpu_custom_call.1} parent=1 // pred_check_branch
      %191 = sbr.rel (%p189) target = $region21
    $region20: #{tpu_custom_call.1} parent=1 // pred_region
      %192 = vst [vmem:[#allocation7] sm:$0xff] 0.0
    $region21: #{tpu_custom_call.1} parent=1 // pred_fallthru
      _
    %v193 = vld [vmem:[#allocation7] sm:$0xff]
    %v194 = vstv %s187
    %v195 = vadd.f32 %v193, %v194
    %196 = vst [vmem:[#allocation7] sm:$0xff] %v195
    // Predicated region
    $region22: #{tpu_custom_call.1} parent=1 // pred_check
      _
    $region23: #{tpu_custom_call.1} parent=1 // pred_check_branch
      %198 = sbr.rel (0) target = $region25
    $region24: #{tpu_custom_call.1} parent=1 // pred_region
      %s200 = ssub.s32 128, 128
      %201 = vsyncadd [#allocation4], %s200
      %s203 = sshll.u32 [#allocation7], 4
      %s204 = int_to_ptr.vmem [resolvable:$true] %s203
      %206 = dma.vmem_to_hbm [thread:$0]  %s204, 128, %s2, [#allocation4]
    $region25: #{tpu_custom_call.1} parent=1 // pred_fallthru
      _
    // Predicated region
    $region26: #{tpu_custom_call.1} parent=1 // pred_check
      _
    $region27: #{tpu_custom_call.1} parent=1 // pred_check_branch
      %208 = sbr.rel (0) target = $region29
    $region28: #{tpu_custom_call.1} parent=1 // pred_region
      %209 = dma.done [#allocation4], 128
    $region29: #{tpu_custom_call.1} parent=1 // pred_fallthru
      _
    %210 = vsyncpa [#allocation3], 1
    %211 = vsyncpa [#allocation6], 1
    %212 = vsyncpa [#allocation4], 1

</llo_original>
